<compile_context>
chip_gen: v6e
topology: v6e:2x2x1
jax: 0.10.0
libtpu: 0.0.40
codegen_flags: <defaults>
</compile_context>

<pallas_src>
import jax
import jax.numpy as jnp
from jax.experimental import pallas as pl
from jax.experimental.pallas import tpu as pltpu


def _attn_compress_kernel(x_ref, madd_ref, w1t_ref, b1_ref, w2_ref, o_ref, s_acc_ref):
    # x_ref:    (Bt, S, H)   hidden embeddings (native dtype), resident across the n axis
    # madd_ref: (Bt, 1, S)   f32 additive mask (0 or -10000)
    # w1t_ref:  (H, tn)      bf16 column chunk of ws1.weight^T
    # b1_ref:   (1, tn)      f32 chunk of ws1.bias
    # w2_ref:   (1, tn)      f32 chunk of ws2.weight (row form, VPU reduce)
    # o_ref:    (Bt, 1, H)   f32 pooled output
    # s_acc_ref:(Bt, S)      f32 score accumulator (scratch)
    Bt, S, H = x_ref.shape
    tn = w1t_ref.shape[1]
    n = pl.program_id(1)

    @pl.when(n == 0)
    def _init():
        s_acc_ref[...] = jnp.zeros_like(s_acc_ref)

    x = x_ref[...]                                      # (Bt, S, H), native dtype
    # bf16 MXU operand (no-op if the producer already supplies bf16 activations).
    # NOTE: keep S a multiple of 8 so this fold (and the reshape below) is layout-free.
    x2 = x.reshape(Bt * S, H).astype(jnp.bfloat16)      # fold batch into the MXU M dim

    # z_chunk = x @ W1^T[:, n-chunk] + b1[n-chunk]: bf16 operands, f32 accumulation.
    z = jnp.dot(x2, w1t_ref[...], preferred_element_type=jnp.float32) + b1_ref[...]
    a3 = jnp.tanh(z).reshape(Bt, S, tn)                 # (Bt, S, tn) f32, dies after reduce
    # score contribution of this column chunk: sum_h tanh(.)[..., h] * w2[h]
    s_acc_ref[...] += jnp.sum(a3 * w2_ref[...], axis=-1)          # (Bt, S) f32

    @pl.when(n == pl.num_programs(1) - 1)
    def _finalize():
        s = s_acc_ref[...].reshape(Bt, 1, S) + madd_ref[...]      # additive mask
        s = s - jnp.max(s, axis=-1, keepdims=True)
        e = jnp.exp(s)
        attn = e * pl.reciprocal(jnp.sum(e, axis=-1, keepdims=True), approx=True)
        # pooled = attn @ x: batched MXU matmul with f32 accumulation (no f32 copy of x).
        pooled = jnp.einsum("bqs,bsh->bqh", attn.astype(x.dtype), x,
                            preferred_element_type=jnp.float32)   # (Bt, 1, H)
        o_ref[...] = pooled.astype(o_ref.dtype)


def _largest_divisor_leq(n, cap):
    cap = max(1, min(cap, n))
    for d in range(cap, 0, -1):
        if n % d == 0:
            return d
    return 1


def _pick_block_n(h, max_tn=512):
    # Column tile of W1: full H when small, else a 128-multiple divisor of H.
    if h <= max_tn:
        return h
    tn = (max_tn // 128) * 128
    while tn >= 128:
        if h % tn == 0:
            return tn
        tn -= 128
    return h   # no 128-multiple divisor: keep W1 untiled


def attention_compression(hidden_embs, attention_mask, w1, b1, w2,
                          *, block_b=8, block_n=512):
    """hidden_embs: (B, S, H); attention_mask: (B, S) or None;
    w1: (H, H), b1: (H,), w2: (1, H)  (torch.nn.Linear conventions)."""
    B, S, H = hidden_embs.shape
    x = jnp.asarray(hidden_embs)   # native dtype; pass bf16 from the producer to halve HBM reads

    if attention_mask is None:
        madd = jnp.zeros((B, 1, S), jnp.float32)
    else:
        madd = jnp.where(jnp.asarray(attention_mask) == 0, -10000.0, 0.0)
        madd = madd.astype(jnp.float32).reshape(B, 1, S)

    # Batch tile: a divisor of B giving >= 2 grid steps so the x DMA pipelines.
    Bt = 1 if B < 2 else _largest_divisor_leq(B, min(block_b, B // 2))
    nb = B // Bt

    # Column tile of W1 (exact: tanh and the w2 dot are per-column).
    tn = _pick_block_n(H, block_n)
    nn = H // tn

    w1t = jnp.asarray(w1, jnp.float32).T.astype(jnp.bfloat16)   # (H, H): x @ W1^T on the MXU
    b1r = jnp.asarray(b1, jnp.float32).reshape(1, H)
    w2r = jnp.asarray(w2, jnp.float32).reshape(1, H)

    # VMEM budget from the actual (double-)buffered blocks + in-kernel f32 chunk, 2x headroom.
    # TODO(synk): on v7x (64 MiB/TC) shrink block_b / block_n if this clamps at the ceiling.
    est = (2 * Bt * S * H * x.dtype.itemsize     # x (double-buffered)
           + 2 * Bt * S * 4                      # additive mask
           + 2 * H * tn * 2 + 4 * tn * 4         # w1t chunk + b1/w2 chunks
           + 2 * Bt * H * 4                      # output
           + Bt * S * 4                          # score scratch
           + 3 * Bt * S * tn * 4)                # z / tanh / product f32 chunk
    vmem_limit = int(min(48 << 20, max(16 << 20, 2 * est)))

    out = pl.pallas_call(
        _attn_compress_kernel,
        out_shape=jax.ShapeDtypeStruct((B, 1, H), jnp.float32),
        grid=(nb, nn),
        in_specs=[
            pl.BlockSpec((Bt, S, H), lambda b, n: (b, 0, 0)),   # resident across n (not re-fetched)
            pl.BlockSpec((Bt, 1, S), lambda b, n: (b, 0, 0)),
            pl.BlockSpec((H, tn), lambda b, n: (0, n)),
            pl.BlockSpec((1, tn), lambda b, n: (0, n)),
            pl.BlockSpec((1, tn), lambda b, n: (0, n)),
        ],
        out_specs=pl.BlockSpec((Bt, 1, H), lambda b, n: (b, 0, 0)),
        scratch_shapes=[pltpu.VMEM((Bt, S), jnp.float32)],
        compiler_params=pltpu.CompilerParams(
            dimension_semantics=("parallel", "arbitrary"),
            vmem_limit_bytes=vmem_limit,
        ),
    )(x, madd, w1t, b1r, w2r)

    return out.reshape(B, H)


def _reference(hidden_embs, attention_mask, w1, b1, w2):
    # Pure-JAX (f32) re-implementation of the PyTorch forward (eval mode).
    a = jnp.tanh(hidden_embs @ w1.T + b1)                   # (B, S, H)
    s = (a @ w2.T)[..., 0]                                  # (B, S)
    if attention_mask is not None:
        s = s + (-10000.0) * (attention_mask == 0).astype(jnp.float32)
    attn = jax.nn.softmax(s, axis=1)[:, None, :]            # (B, 1, S)
    return (attn @ hidden_embs)[:, 0, :]                    # (B, H)


if __name__ == "__main__":
    B, S, H = 2, 8, 32

    key = jax.random.PRNGKey(0)
    k_x, k_w1, k_w2 = jax.random.split(key, 3)

    hidden = jax.random.normal(k_x, (B, S, H), jnp.float32)

    # mask with some padded positions (zeros) to exercise the masking path
    mask = jnp.ones((B, S), jnp.float32).at[0, 6:].set(0.0).at[1, 5:].set(0.0)

    # Deterministic parameter init matching the module's __init__ shapes:
    #   ws1: Linear(H, H)  -> weight (H, H) xavier_uniform, bias zeros
    #   ws2: Linear(H, 1, bias=False) -> weight (1, H) xavier_uniform
    bound1 = (6.0 / (H + H)) ** 0.5
    w1 = jax.random.uniform(k_w1, (H, H), jnp.float32, -bound1, bound1)
    b1 = jnp.zeros((H,), jnp.float32)
    bound2 = (6.0 / (1 + H)) ** 0.5
    w2 = jax.random.uniform(k_w2, (1, H), jnp.float32, -bound2, bound2)

    out = attention_compression(hidden, mask, w1, b1, w2)
    out = jax.block_until_ready(out)

    ref = _reference(hidden, mask, w1, b1, w2)
    assert out.shape == (B, H)
    # bf16 W1-matmul operands in the kernel -> relaxed tolerance vs the pure-f32 reference
    err = float(jnp.max(jnp.abs(out - ref)))
    assert jnp.allclose(out, ref, atol=3e-2, rtol=3e-2), f"max abs err = {err}"

    print("KERNEL_OK")
</pallas_src>

<mosaic_0001>
module attributes {stable_mosaic.version = 11 : i64} {
  func.func @_attn_compress_kernel(%arg0: i32, %arg1: i32, %arg2: memref<1x8x32xf32, #tpu.memory_space<vmem>>, %arg3: memref<1x1x8xf32, #tpu.memory_space<vmem>>, %arg4: memref<32x32xbf16, #tpu.memory_space<vmem>>, %arg5: memref<1x32xf32, #tpu.memory_space<vmem>>, %arg6: memref<1x32xf32, #tpu.memory_space<vmem>>, %arg7: memref<1x1x32xf32, #tpu.memory_space<vmem>>, %arg8: memref<1x8xf32, #tpu.memory_space<vmem>>) attributes {dimension_semantics = [#tpu.dimension_semantics<parallel>, #tpu.dimension_semantics<arbitrary>], iteration_bounds = array<i64: 2, 1>, scalar_prefetch = 0 : i64, scratch_operands = 1 : i64, tpu.core_type = #tpu.core_type<tc>, window_params = [{transform_indices = @transform_0, window_bounds = array<i64: 1, 8, 32>}, {transform_indices = @transform_1, window_bounds = array<i64: 1, 1, 8>}, {transform_indices = @transform_2, window_bounds = array<i64: 32, 32>}, {transform_indices = @transform_3, window_bounds = array<i64: 1, 32>}, {transform_indices = @transform_4, window_bounds = array<i64: 1, 32>}, {transform_indices = @transform_5, window_bounds = array<i64: 1, 1, 32>}]} {
    %c0_i32 = arith.constant 0 : i32
    %0 = arith.cmpi eq, %arg1, %c0_i32 : i32
    %1 = arith.extui %0 : i1 to i32
    %c0_i32_0 = arith.constant 0 : i32
    %2 = arith.cmpi ne, %1, %c0_i32_0 : i32
    scf.if %2 {
      %cst_16 = arith.constant 0.000000e+00 : f32
      %24 = vector.broadcast %cst_16 : f32 to vector<1x8xf32>
      %c0_17 = arith.constant 0 : index
      %c0_18 = arith.constant 0 : index
      %25 = vector.load %arg8[%c0_17, %c0_18] : memref<1x8xf32, #tpu.memory_space<vmem>>, vector<1x8xf32>
      tpu.vector_store %arg8[%c0_17, %c0_18], %24 {strides = array<i32>} : memref<1x8xf32, #tpu.memory_space<vmem>>, vector<1x8xf32>,
    } else {
    }
    %c0 = arith.constant 0 : index
    %c0_1 = arith.constant 0 : index
    %c0_2 = arith.constant 0 : index
    %3 = vector.load %arg2[%c0, %c0_1, %c0_2] : memref<1x8x32xf32, #tpu.memory_space<vmem>>, vector<1x8x32xf32>
    %4 = vector.shape_cast %3 : vector<1x8x32xf32> to vector<8x32xf32>
    %5 = arith.truncf %4 : vector<8x32xf32> to vector<8x32xbf16>
    %c0_3 = arith.constant 0 : index
    %c0_4 = arith.constant 0 : index
    %6 = vector.load %arg4[%c0_3, %c0_4] : memref<32x32xbf16, #tpu.memory_space<vmem>>, vector<32x32xbf16>
    %cst = arith.constant dense<0.000000e+00> : vector<8x32xf32>
    %7 = tpu.matmul %5, %6, %cst {dimension_numbers = #tpu.dot_dimension_numbers<[1], [0], [0], [1], [0, 0, 1, 1], [], []>} : vector<8x32xbf16>, vector<32x32xbf16>, vector<8x32xf32> -> vector<8x32xf32>
    %c0_5 = arith.constant 0 : index
    %c0_6 = arith.constant 0 : index
    %8 = vector.load %arg5[%c0_5, %c0_6] : memref<1x32xf32, #tpu.memory_space<vmem>>, vector<1x32xf32>
    %9 = vector.broadcast %8 : vector<1x32xf32> to vector<8x32xf32>
    %10 = arith.addf %7, %9 : vector<8x32xf32>
    %11 = math.tanh %10 : vector<8x32xf32>
    %12 = vector.shape_cast %11 : vector<8x32xf32> to vector<1x8x32xf32>
    %c0_7 = arith.constant 0 : index
    %c0_8 = arith.constant 0 : index
    %13 = vector.load %arg8[%c0_7, %c0_8] : memref<1x8xf32, #tpu.memory_space<vmem>>, vector<1x8xf32>
    %c0_9 = arith.constant 0 : index
    %c0_10 = arith.constant 0 : index
    %14 = vector.load %arg6[%c0_9, %c0_10] : memref<1x32xf32, #tpu.memory_space<vmem>>, vector<1x32xf32>
    %15 = vector.shape_cast %14 : vector<1x32xf32> to vector<1x1x32xf32>
    %16 = vector.broadcast %15 : vector<1x1x32xf32> to vector<1x8x32xf32>
    %17 = arith.mulf %12, %16 : vector<1x8x32xf32>
    %cst_11 = arith.constant dense<0.000000e+00> : vector<1x8xf32>
    %18 = vector.multi_reduction <add>, %17, %cst_11 [2] : vector<1x8x32xf32> to vector<1x8xf32>
    %19 = arith.addf %13, %18 : vector<1x8xf32>
    %c0_12 = arith.constant 0 : index
    %c0_13 = arith.constant 0 : index
    %20 = vector.load %arg8[%c0_12, %c0_13] : memref<1x8xf32, #tpu.memory_space<vmem>>, vector<1x8xf32>
    tpu.vector_store %arg8[%c0_12, %c0_13], %19 {strides = array<i32>} : memref<1x8xf32, #tpu.memory_space<vmem>>, vector<1x8xf32>,
    %c0_i32_14 = arith.constant 0 : i32
    %21 = arith.cmpi eq, %arg1, %c0_i32_14 : i32
    %22 = arith.extui %21 : i1 to i32
    %c0_i32_15 = arith.constant 0 : i32
    %23 = arith.cmpi ne, %22, %c0_i32_15 : i32
    scf.if %23 {
      %c0_16 = arith.constant 0 : index
      %c0_17 = arith.constant 0 : index
      %24 = vector.load %arg8[%c0_16, %c0_17] : memref<1x8xf32, #tpu.memory_space<vmem>>, vector<1x8xf32>
      %25 = vector.shape_cast %24 : vector<1x8xf32> to vector<1x1x8xf32>
      %c0_18 = arith.constant 0 : index
      %c0_19 = arith.constant 0 : index
      %c0_20 = arith.constant 0 : index
      %26 = vector.load %arg3[%c0_18, %c0_19, %c0_20] : memref<1x1x8xf32, #tpu.memory_space<vmem>>, vector<1x1x8xf32>
      %27 = arith.addf %25, %26 : vector<1x1x8xf32>
      %cst_21 = arith.constant dense<0xFF800000> : vector<1x1xf32>
      %28 = vector.multi_reduction <maximumf>, %27, %cst_21 [2] : vector<1x1x8xf32> to vector<1x1xf32>
      %29 = vector.shape_cast %28 : vector<1x1xf32> to vector<1x1x1xf32>
      %30 = vector.broadcast %29 : vector<1x1x1xf32> to vector<1x1x8xf32>
      %31 = arith.subf %27, %30 : vector<1x1x8xf32>
      %32 = math.exp %31 : vector<1x1x8xf32>
      %cst_22 = arith.constant dense<0.000000e+00> : vector<1x1xf32>
      %33 = vector.multi_reduction <add>, %32, %cst_22 [2] : vector<1x1x8xf32> to vector<1x1xf32>
      %34 = vector.shape_cast %33 : vector<1x1xf32> to vector<1x1x1xf32>
      %35 = tpu.reciprocal %34 {approx = true} : vector<1x1x1xf32> -> vector<1x1x1xf32>
      %36 = vector.broadcast %35 : vector<1x1x1xf32> to vector<1x1x8xf32>
      %37 = arith.mulf %32, %36 : vector<1x1x8xf32>
      "tpu.trace_start"() <{level = 10 : i32, message = "bqs,bsh->bqh"}> : () -> ()
      %cst_23 = arith.constant dense<0.000000e+00> : vector<1x1x32xf32>
      %38 = tpu.matmul %37, %3, %cst_23 {dimension_numbers = #tpu.dot_dimension_numbers<[2], [1], [1], [2], [0, 0, 0, 1, 1, 2], [0], [0]>} : vector<1x1x8xf32>, vector<1x8x32xf32>, vector<1x1x32xf32> -> vector<1x1x32xf32>
      "tpu.trace_stop"() : () -> ()
      %c0_24 = arith.constant 0 : index
      %c0_25 = arith.constant 0 : index
      %c0_26 = arith.constant 0 : index
      %39 = vector.load %arg7[%c0_24, %c0_25, %c0_26] : memref<1x1x32xf32, #tpu.memory_space<vmem>>, vector<1x1x32xf32>
      tpu.vector_store %arg7[%c0_24, %c0_25, %c0_26], %38 {strides = array<i32>} : memref<1x1x32xf32, #tpu.memory_space<vmem>>, vector<1x1x32xf32>,
    } else {
    }
    return
  }
  func.func @transform_0(%arg0: i32, %arg1: i32) -> (i32, i32, i32) {
    %c0_i32 = arith.constant 0 : i32
    %c0_i32_0 = arith.constant 0 : i32
    %c0_i32_1 = arith.constant 0 : i32
    return %arg0, %c0_i32, %c0_i32_0 : i32, i32, i32
  }
  func.func @transform_1(%arg0: i32, %arg1: i32) -> (i32, i32, i32) {
    %c0_i32 = arith.constant 0 : i32
    %c0_i32_0 = arith.constant 0 : i32
    %c0_i32_1 = arith.constant 0 : i32
    return %arg0, %c0_i32, %c0_i32_0 : i32, i32, i32
  }
  func.func @transform_2(%arg0: i32, %arg1: i32) -> (i32, i32) {
    %c0_i32 = arith.constant 0 : i32
    %c0_i32_0 = arith.constant 0 : i32
    return %c0_i32, %arg1 : i32, i32
  }
  func.func @transform_3(%arg0: i32, %arg1: i32) -> (i32, i32) {
    %c0_i32 = arith.constant 0 : i32
    %c0_i32_0 = arith.constant 0 : i32
    return %c0_i32, %arg1 : i32, i32
  }
  func.func @transform_4(%arg0: i32, %arg1: i32) -> (i32, i32) {
    %c0_i32 = arith.constant 0 : i32
    %c0_i32_0 = arith.constant 0 : i32
    return %c0_i32, %arg1 : i32, i32
  }
  func.func @transform_5(%arg0: i32, %arg1: i32) -> (i32, i32, i32) {
    %c0_i32 = arith.constant 0 : i32
    %c0_i32_0 = arith.constant 0 : i32
    %c0_i32_1 = arith.constant 0 : i32
    return %arg0, %c0_i32, %c0_i32_0 : i32, i32, i32
  }
}

</mosaic_0001>

<llo_original>
// kernel: tpu_custom_call.1
$region0: #{tpu_custom_call.1}
  #allocation0 [shape = 'u32[]', space=smem, size = 0x4, offset = 0x4, fixed_abs, tag = 'smem constant byte address 0x4 - core index']
  #allocation1 [shape = 'u32[144,128]{1,0:T(1,128)}', space=vmem, size = 0x12000, scoped, tag = 'internal scratch']
  #allocation2 [shape = 'f32[1,8]{1,0:T(1,128)}', space=vmem, size = 0x200, scoped, tag = 'scratch operand']
  %s0 = inlined_call_operand.hbm [shape: f32[2,8,32], index: 0, kind: input, shape index: {}]
  %s1 = inlined_call_operand.hbm [shape: f32[2,1,8], index: 1, kind: input, shape index: {}]
  %s2 = inlined_call_operand.hbm [shape: bf16[32,32], index: 2, kind: input, shape index: {}]
  %s3 = inlined_call_operand.vmem [shape: f32[1,32], index: 3, kind: input, shape index: {}]
  %s4 = inlined_call_operand.vmem [shape: f32[1,32], index: 4, kind: input, shape index: {}]
  %s5 = inlined_call_operand.hbm [shape: f32[2,1,32], index: 5, kind: output, shape index: {}]
  %s6 = sld [smem:[#allocation0]]
  $region73: #{tpu_custom_call.1} parent=0
    _
  %s8 = ssub.s32 1, %s6
  %s9 = scalar_select 0, %s8, %s6
  $region1: #{tpu_custom_call.1} parent=0
    #allocation3 [shape = 'u8[8192]{0}', space=vmem, size = 0x2000, scoped, tag = 'input window, operand 0']
    #allocation4 [shape = 's32[2]{0}', space=sflag, size = 0x8, scoped, tag = 'scoped memory for tpu_custom_call.1']
    #allocation5 [shape = 's32[2]{0}', space=sflag, size = 0x8, scoped, tag = 'scoped memory for tpu_custom_call.1']
    #allocation6 [shape = 'u8[1024]{0}', space=vmem, size = 0x400, scoped, tag = 'input window, operand 1']
    #allocation7 [shape = 's32[2]{0}', space=sflag, size = 0x8, scoped, tag = 'scoped memory for tpu_custom_call.1']
    #allocation8 [shape = 'u8[8192]{0}', space=vmem, size = 0x2000, scoped, tag = 'input window, operand 2, single buffered']
    #allocation9 [shape = 'u8[1024]{0}', space=vmem, size = 0x400, scoped, tag = 'output window, operand 0']
    %10 = vsyncpa [#allocation4], 0
    %s11 = scalar_lea.sflag [#allocation4], 1
    %12 = vsyncpa %s11, 0
    %13 = vsyncpa [#allocation7], 0
    %s14 = scalar_lea.sflag [#allocation7], 1
    %15 = vsyncpa %s14, 0
    %16 = vsyncpa [#allocation5], 0
    %s17 = scalar_lea.sflag [#allocation5], 1
    %18 = vsyncpa %s17, 0
    loop: start=0, step=1, limit=4
    $region2: #{tpu_custom_call.1} parent=1 // loop_pre_header
      _
    $region3: #{tpu_custom_call.1} parent=1 // loop_header
      %s20 = sphi 0, %s24
      %p21 = scmp.ge.s32.totalorder %s20, 4
      %s27 = sphi 0, %s39
      %s28 = sphi 0, %s35
      %s29 = sphi 0, %s27
      %s30 = sphi 0, %s28
      %s31 = sphi 0, %s29
      %s32 = sphi 0, %s30
      %s42 = sphi 0, %s44
      %s45 = sphi 0, %s42
      %s46 = sphi 0, %s45
      %s62 = sphi 0, %s46
      %s68 = sphi 0, %s70
      %s71 = sphi 0, %s68
      %s72 = sphi 0, %s71
      %s88 = sphi 0, %s72
      %s94 = sphi 0, %s96
      %s97 = sphi 0, %s94
      %s98 = sphi 0, %s97
      %s114 = sphi 0, %s98
      %s120 = sphi 0, %s122
      %s123 = sphi 0, %s120
      %s124 = sphi 0, %s123
      %s140 = sphi 0, %s124
      %s146 = sphi 0, %s148
      %s149 = sphi 0, %s146
      %s150 = sphi 0, %s149
      %s166 = sphi 0, %s150
      %s172 = sphi 0, %s174
      %s175 = sphi 0, %s172
      %s176 = sphi 0, %s175
      %s192 = sphi 0, %s176
    $region4: #{tpu_custom_call.1} parent=1 // loop_header_branch
      %23 = sbr.rel (%p21) target = $region8
    $region5: #{tpu_custom_call.1} parent=1 // loop_body
      %s25 = ssub.s32 %s20, 1
      %s26 = ssub.s32 %s20, 2
      %s33 = sadd.s32 1, %s28
      %p34 = scmp.ge.s32.totalorder %s33, 1
      %s35 = scalar_select %p34, 0, %s33
      %s36 = sadd.s32 1, %s27
      %s37 = scalar_select %p34, %s36, %s27
      %p38 = scmp.ge.s32.totalorder %s37, 2
      %s39 = scalar_select %p38, 0, %s37
      %s40 = ssub.s32 %s27, %s39
      %p41 = scmp.eq.s32.totalorder %s40, 0
      %s43 = sadd.s32 %s42, 1
      %s44 = scalar_select %p41, %s42, %s43
      %p47 = pneg %p41
      %p48 = scmp.eq.s32.totalorder %s20, 1
      %p49 = por %p47, %p48
      %p50 = scmp.ne.s32.totalorder %s42, %s45
      %p51 = scmp.eq.s32.totalorder %s20, 0
      %p52 = por %p50, %p51
      %p53 = scmp.ne.s32.totalorder %s42, %s45
      %p54 = scmp.eq.s32.totalorder %s25, 1
      %p55 = por %p53, %p54
      %p56 = scmp.ne.s32.totalorder %s45, %s46
      %p57 = scmp.eq.s32.totalorder %s25, 0
      %p58 = por %p56, %p57
      %p59 = scmp.ne.s32.totalorder %s45, %s46
      %p60 = scmp.eq.s32.totalorder %s26, 1
      %p61 = por %p59, %p60
      %p63 = scmp.ne.s32.totalorder %s46, %s62
      %p64 = scmp.eq.s32.totalorder %s26, 0
      %p65 = por %p63, %p64
      %s66 = ssub.s32 %s27, %s39
      %p67 = scmp.eq.s32.totalorder %s66, 0
      %s69 = sadd.s32 %s68, 1
      %s70 = scalar_select %p67, %s68, %s69
      %p73 = pneg %p67
      %p74 = scmp.eq.s32.totalorder %s20, 1
      %p75 = por %p73, %p74
      %p76 = scmp.ne.s32.totalorder %s68, %s71
      %p77 = scmp.eq.s32.totalorder %s20, 0
      %p78 = por %p76, %p77
      %p79 = scmp.ne.s32.totalorder %s68, %s71
      %p80 = scmp.eq.s32.totalorder %s25, 1
      %p81 = por %p79, %p80
      %p82 = scmp.ne.s32.totalorder %s71, %s72
      %p83 = scmp.eq.s32.totalorder %s25, 0
      %p84 = por %p82, %p83
      %p85 = scmp.ne.s32.totalorder %s71, %s72
      %p86 = scmp.eq.s32.totalorder %s26, 1
      %p87 = por %p85, %p86
      %p89 = scmp.ne.s32.totalorder %s72, %s88
      %p90 = scmp.eq.s32.totalorder %s26, 0
      %p91 = por %p89, %p90
      %s92 = ssub.s32 %s28, %s35
      %p93 = scmp.eq.s32.totalorder %s92, 0
      %s95 = sadd.s32 %s94, 1
      %s96 = scalar_select %p93, %s94, %s95
      %p99 = pneg %p93
      %p100 = scmp.eq.s32.totalorder %s20, 1
      %p101 = por %p99, %p100
      %p102 = scmp.ne.s32.totalorder %s94, %s97
      %p103 = scmp.eq.s32.totalorder %s20, 0
      %p104 = por %p102, %p103
      %p105 = scmp.ne.s32.totalorder %s94, %s97
      %p106 = scmp.eq.s32.totalorder %s25, 1
      %p107 = por %p105, %p106
      %p108 = scmp.ne.s32.totalorder %s97, %s98
      %p109 = scmp.eq.s32.totalorder %s25, 0
      %p110 = por %p108, %p109
      %p111 = scmp.ne.s32.totalorder %s97, %s98
      %p112 = scmp.eq.s32.totalorder %s26, 1
      %p113 = por %p111, %p112
      %p115 = scmp.ne.s32.totalorder %s98, %s114
      %p116 = scmp.eq.s32.totalorder %s26, 0
      %p117 = por %p115, %p116
      %s118 = ssub.s32 %s28, %s35
      %p119 = scmp.eq.s32.totalorder %s118, 0
      %s121 = sadd.s32 %s120, 1
      %s122 = scalar_select %p119, %s120, %s121
      %p125 = pneg %p119
      %p126 = scmp.eq.s32.totalorder %s20, 1
      %p127 = por %p125, %p126
      %p128 = scmp.ne.s32.totalorder %s120, %s123
      %p129 = scmp.eq.s32.totalorder %s20, 0
      %p130 = por %p128, %p129
      %p131 = scmp.ne.s32.totalorder %s120, %s123
      %p132 = scmp.eq.s32.totalorder %s25, 1
      %p133 = por %p131, %p132
      %p134 = scmp.ne.s32.totalorder %s123, %s124
      %p135 = scmp.eq.s32.totalorder %s25, 0
      %p136 = por %p134, %p135
      %p137 = scmp.ne.s32.totalorder %s123, %s124
      %p138 = scmp.eq.s32.totalorder %s26, 1
      %p139 = por %p137, %p138
      %p141 = scmp.ne.s32.totalorder %s124, %s140
      %p142 = scmp.eq.s32.totalorder %s26, 0
      %p143 = por %p141, %p142
      %s144 = ssub.s32 %s28, %s35
      %p145 = scmp.eq.s32.totalorder %s144, 0
      %s147 = sadd.s32 %s146, 1
      %s148 = scalar_select %p145, %s146, %s147
      %p151 = pneg %p145
      %p152 = scmp.eq.s32.totalorder %s20, 1
      %p153 = por %p151, %p152
      %p154 = scmp.ne.s32.totalorder %s146, %s149
      %p155 = scmp.eq.s32.totalorder %s20, 0
      %p156 = por %p154, %p155
      %p157 = scmp.ne.s32.totalorder %s146, %s149
      %p158 = scmp.eq.s32.totalorder %s25, 1
      %p159 = por %p157, %p158
      %p160 = scmp.ne.s32.totalorder %s149, %s150
      %p161 = scmp.eq.s32.totalorder %s25, 0
      %p162 = por %p160, %p161
      %p163 = scmp.ne.s32.totalorder %s149, %s150
      %p164 = scmp.eq.s32.totalorder %s26, 1
      %p165 = por %p163, %p164
      %p167 = scmp.ne.s32.totalorder %s150, %s166
      %p168 = scmp.eq.s32.totalorder %s26, 0
      %p169 = por %p167, %p168
      %s170 = ssub.s32 %s27, %s39
      %p171 = scmp.eq.s32.totalorder %s170, 0
      %s173 = sadd.s32 %s172, 1
      %s174 = scalar_select %p171, %s172, %s173
      %p177 = pneg %p171
      %p178 = scmp.eq.s32.totalorder %s20, 1
      %p179 = por %p177, %p178
      %p180 = scmp.ne.s32.totalorder %s172, %s175
      %p181 = scmp.eq.s32.totalorder %s20, 0
      %p182 = por %p180, %p181
      %p183 = scmp.ne.s32.totalorder %s172, %s175
      %p184 = scmp.eq.s32.totalorder %s25, 1
      %p185 = por %p183, %p184
      %p186 = scmp.ne.s32.totalorder %s175, %s176
      %p187 = scmp.eq.s32.totalorder %s25, 0
      %p188 = por %p186, %p187
      %p189 = scmp.ne.s32.totalorder %s175, %s176
      %p190 = scmp.eq.s32.totalorder %s26, 1
      %p191 = por %p189, %p190
      %p193 = scmp.ne.s32.totalorder %s176, %s192
      %p194 = scmp.eq.s32.totalorder %s26, 0
      %p195 = por %p193, %p194
      %p196 = scmp.le.s32.totalorder 1, %s20
      %p197 = scmp.lt.s32.totalorder %s20, 3
      %p198 = pnand %p196, %p197
      %p199 = pneg %p198
      // Predicated region
      $region9: #{tpu_custom_call.1} parent=5 // pred_check
        _
      $region10: #{tpu_custom_call.1} parent=5 // pred_check_branch
        %201 = sbr.rel (%p198) target = $region12
      $region11: #{tpu_custom_call.1} parent=5 // pred_region
        %s202 = ssub.s32 %s20, 1
        // Predicated region
        $region13: #{tpu_custom_call.1} parent=11 // pred_check
          %p203 = pneg %p110
        $region14: #{tpu_custom_call.1} parent=11 // pred_check_branch
          %205 = sbr.rel (%p203) target = $region16
        $region15: #{tpu_custom_call.1} parent=11 // pred_region
          %s207 = ssub.s32 256, 256
          %208 = vsyncadd [#allocation7], %s207
          %s209 = smul.addr %s30, 64
          %s210 = scalar_lea.hbm %s2, %s209
          %s211 = sshll.u32 [#allocation8], 4
          %s212 = int_to_ptr.vmem [resolvable:$true] %s211
          %217 = dma.hbm_to_vmem [thread:$0]  %s210, 256, %s212, [#allocation7], 64, 64, 4
        $region16: #{tpu_custom_call.1} parent=11 // pred_fallthru
          _
        // Predicated region
        $region17: #{tpu_custom_call.1} parent=11 // pred_check
          %p218 = pneg %p136
        $region18: #{tpu_custom_call.1} parent=11 // pred_check_branch
          %220 = sbr.rel (%p218) target = $region20
        $region19: #{tpu_custom_call.1} parent=11 // pred_region
          %p221 = scmp.lt.s32.totalorder %s30, 0
          %s222 = scalar_select %p221, %s30, 0
          %s223 = scalar_lea.vmem %s3, %s222
        $region20: #{tpu_custom_call.1} parent=11 // pred_fallthru
          _
        // Predicated region
        $region21: #{tpu_custom_call.1} parent=11 // pred_check
          %p224 = pneg %p162
        $region22: #{tpu_custom_call.1} parent=11 // pred_check_branch
          %226 = sbr.rel (%p224) target = $region24
        $region23: #{tpu_custom_call.1} parent=11 // pred_region
          %p227 = scmp.lt.s32.totalorder %s30, 0
          %s228 = scalar_select %p227, %s30, 0
          %s229 = scalar_lea.vmem %s4, %s228
        $region24: #{tpu_custom_call.1} parent=11 // pred_fallthru
          _
      $region12: #{tpu_custom_call.1} parent=5 // pred_fallthru
        _
      %p230 = scmp.lt.s32.totalorder %s20, 2
      // Predicated region
      $region25: #{tpu_custom_call.1} parent=5 // pred_check
        %p231 = pneg %p230
      $region26: #{tpu_custom_call.1} parent=5 // pred_check_branch
        %233 = sbr.rel (%p231) target = $region28
      $region27: #{tpu_custom_call.1} parent=5 // pred_region
        // Predicated region
        $region29: #{tpu_custom_call.1} parent=27 // pred_check
          %p234 = pneg %p52
        $region30: #{tpu_custom_call.1} parent=27 // pred_check_branch
          %236 = sbr.rel (%p234) target = $region32
        $region31: #{tpu_custom_call.1} parent=27 // pred_region
          %s237 = sand.u32 %s42, 1
          %s238 = scalar_lea.sflag [#allocation4], %s237
          %s239 = sand.u32 %s42, 1
          %s240 = smul.addr %s239, 8
          %s241 = scalar_lea.vmem [#allocation3], %s240
          %s243 = ssub.s32 128, 128
          %244 = vsyncadd %s238, %s243
          %s245 = smul.addr %s27, 128
          %s246 = scalar_lea.hbm %s0, %s245
          %s248 = sshll.u32 %s241, 4
          %s249 = int_to_ptr.vmem [resolvable:$true] %s248
          %251 = dma.hbm_to_vmem [thread:$0]  %s246, 128, %s249, %s238
        $region32: #{tpu_custom_call.1} parent=27 // pred_fallthru
          _
        // Predicated region
        $region33: #{tpu_custom_call.1} parent=27 // pred_check
          %p252 = pneg %p78
        $region34: #{tpu_custom_call.1} parent=27 // pred_check_branch
          %254 = sbr.rel (%p252) target = $region36
        $region35: #{tpu_custom_call.1} parent=27 // pred_region
          %s255 = sand.u32 %s20, 1
          %s256 = scalar_lea.sflag [#allocation7], %s255
          %s257 = sand.u32 %s68, 1
          %s258 = scalar_lea.vmem [#allocation6], %s257
          %s260 = ssub.s32 16, 16
          %261 = vsyncadd %s256, %s260
          %s262 = smul.addr %s27, 16
          %s263 = scalar_lea.hbm %s1, %s262
          %s265 = sshll.u32 %s258, 4
          %s266 = int_to_ptr.vmem [resolvable:$true] %s265
          %268 = dma.hbm_to_vmem [thread:$0]  %s263, 16, %s266, %s256
        $region36: #{tpu_custom_call.1} parent=27 // pred_fallthru
          _
      $region28: #{tpu_custom_call.1} parent=5 // pred_fallthru
        _
      %p269 = scmp.le.s32.totalorder 1, %s20
      %p270 = scmp.lt.s32.totalorder %s20, 3
      %p271 = pnand %p269, %p270
      %p272 = pneg %p271
      // Predicated region
      $region37: #{tpu_custom_call.1} parent=5 // pred_check
        _
      $region38: #{tpu_custom_call.1} parent=5 // pred_check_branch
        %274 = sbr.rel (%p271) target = $region40
      $region39: #{tpu_custom_call.1} parent=5 // pred_region
        %s275 = ssub.s32 %s20, 1
        %s276 = sand.u32 %s45, 1
        %s277 = scalar_lea.sflag [#allocation4], %s276
        %s278 = sand.u32 %s45, 1
        %s279 = smul.addr %s278, 8
        %s280 = scalar_lea.vmem [#allocation3], %s279
        // Predicated region
        $region41: #{tpu_custom_call.1} parent=39 // pred_check
          %p281 = pneg %p58
        $region42: #{tpu_custom_call.1} parent=39 // pred_check_branch
          %283 = sbr.rel (%p281) target = $region44
        $region43: #{tpu_custom_call.1} parent=39 // pred_region
          %284 = dma.done %s277, 128
        $region44: #{tpu_custom_call.1} parent=39 // pred_fallthru
          _
        %s285 = sand.u32 %s25, 1
        %s286 = scalar_lea.sflag [#allocation7], %s285
        %s287 = sand.u32 %s71, 1
        %s288 = scalar_lea.vmem [#allocation6], %s287
        // Predicated region
        $region45: #{tpu_custom_call.1} parent=39 // pred_check
          %p289 = pneg %p84
        $region46: #{tpu_custom_call.1} parent=39 // pred_check_branch
          %291 = sbr.rel (%p289) target = $region48
        $region47: #{tpu_custom_call.1} parent=39 // pred_region
          %292 = dma.done %s286, 16
        $region48: #{tpu_custom_call.1} parent=39 // pred_fallthru
          _
        // Predicated region
        $region49: #{tpu_custom_call.1} parent=39 // pred_check
          %p293 = pneg %p110
        $region50: #{tpu_custom_call.1} parent=39 // pred_check_branch
          %295 = sbr.rel (%p293) target = $region52
        $region51: #{tpu_custom_call.1} parent=39 // pred_region
          %296 = dma.done [#allocation7], 256
        $region52: #{tpu_custom_call.1} parent=39 // pred_fallthru
          _
        %s297 = sand.u32 %s45, 1
        %s298 = scalar_lea.sflag [#allocation4], %s297
        %s299 = sand.u32 %s45, 1
        %s300 = smul.addr %s299, 8
        %s301 = scalar_lea.vmem [#allocation3], %s300
        %p302 = pneg %p58
        %p303 = pneg %p55
        %s304 = sand.u32 %s25, 1
        %s305 = scalar_lea.sflag [#allocation7], %s304
        %s306 = sand.u32 %s71, 1
        %s307 = scalar_lea.vmem [#allocation6], %s306
        %p308 = pneg %p84
        %p309 = pneg %p81
        %p310 = pneg %p110
        %p311 = pneg %p107
        %p312 = scmp.lt.s32.totalorder %s30, 0
        %s313 = scalar_select %p312, %s30, 0
        %s314 = scalar_lea.vmem %s3, %s313
        %p315 = pneg %p136
        %p316 = pneg %p133
        %p317 = scmp.lt.s32.totalorder %s30, 0
        %s318 = scalar_select %p317, %s30, 0
        %s319 = scalar_lea.vmem %s4, %s318
        %p320 = pneg %p162
        %p321 = pneg %p159
        %p322 = pneg %p188
        %p323 = pneg %p185
        %s324 = sand.u32 %s175, 1
        %s325 = scalar_lea.sflag [#allocation5], %s324
        %s326 = sand.u32 %s175, 1
        %s327 = scalar_lea.vmem [#allocation9], %s326
        %p328 = scmp.lt.s32.totalorder %s30, 0
        %s329 = scalar_select %p328, %s30, 0
        %s330 = scalar_lea.vmem %s3, %s329
        %p331 = scmp.lt.s32.totalorder %s30, 0
        %s332 = scalar_select %p331, %s30, 0
        %s333 = scalar_lea.vmem %s4, %s332
        %p335 = scmp.eq.s32.totalorder %s30, 0
        // Predicated region
        $region53: #{tpu_custom_call.1} parent=39 // pred_check
          %p336 = pneg %p335
        $region54: #{tpu_custom_call.1} parent=39 // pred_check_branch
          %338 = sbr.rel (%p336) target = $region56
        $region55: #{tpu_custom_call.1} parent=39 // pred_region
          %vm339 = vcmask 57344
          %340 = vst.msk [vmem:[#allocation2] sm:$0x1] %vm339, 0.0
        $region56: #{tpu_custom_call.1} parent=39 // pred_fallthru
          _
        %v341 = vld [vmem:[%s280] sm:$0xff]
        %v342 = vpack.c.bf16 %v341, %v341
        %v343 = vld [vmem:[#allocation8] sm:$0xf]
        %v344 = vld [vmem:[#allocation8 + $0x4] sm:$0xf]
        %v345 = vld [vmem:[#allocation8 + $0x8] sm:$0xf]
        %v346 = vld [vmem:[#allocation8 + $0xc] sm:$0xf]
        %v347 = vld [vmem:[%s330] sm:$0x1]
        %v349 = vlaneseq
        %v350 = vshrl.u32 %v349, 7
        %v351 = vsub.s32 0, %v350
        %v352 = vrot.slane %v347, %v351
        %v358 = vunpack.c.l.b16 %v343
        %v359 = vunpack.c.l.b16 %v344
        %v360 = vunpack.c.l.b16 %v345
        %v361 = vunpack.c.l.b16 %v346
        %v362 = vpack.c.b16 %v359, %v358
        %v363 = vpack.c.b16 %v361, %v360
        %vm366 = vcmask 261120
        %v368 = vsel %vm366, %v342, 0
        %370 = vmatprep.subr.bf16.mxu0 0
        %371 = vmatpush1.bf16.msra.mxu0 0
        %372 = vmatprep.subr.bf16.mxu0 0
        %373 = vmatpush1.bf16.msra.mxu0 0
        %374 = vmatprep.subr.bf16.mxu0 0
        %375 = vmatpush1.bf16.msra.mxu0 0
        %376 = vmatprep.subr.bf16.mxu0 0
        %377 = vmatpush1.bf16.msra.mxu0 0
        %378 = vmatprep.subr.bf16.mxu0 0
        %379 = vmatpush1.bf16.msra.mxu0 0
        %380 = vmatprep.subr.bf16.mxu0 0
        %381 = vmatpush1.bf16.msra.mxu0 0
        %382 = vmatprep.subr.bf16.mxu0 0
        %383 = vmatpush1.bf16.msra.mxu0 %v363
        %384 = vmatprep.subr.bf16.mxu0 0
        %385 = vmatpush1.bf16.msra.mxu0 %v362
        %386 = vmatprep.subr.bf16.mxu0 0
        %387 = vmatpush2.bf16.msra.mxu0 0
        %388 = vmatprep.subr.bf16.mxu0 0
        %389 = vmatpush2.bf16.msra.mxu0 0
        %390 = vmatprep.subr.bf16.mxu0 0
        %391 = vmatpush2.bf16.msra.mxu0 0
        %392 = vmatprep.subr.bf16.mxu0 0
        %393 = vmatpush2.bf16.msra.mxu0 0
        %394 = vmatprep.subr.bf16.mxu0 0
        %395 = vmatpush2.bf16.msra.mxu0 0
        %396 = vmatprep.subr.bf16.mxu0 0
        %397 = vmatpush2.bf16.msra.mxu0 0
        %398 = vmatprep.subr.bf16.mxu0 0
        %399 = vmatpush2.bf16.msra.mxu0 0
        %400 = vmatprep.subr.bf16.mxu0 0
        %401 = vmatpush2.bf16.msra.mxu0 0
        %402 = vmatprep.mubr.bf16.mxu0 0
        %403 = vmatmul.mubr.bf16.gmra.mxu0 %v368
        %v404 = vpop.f32.mrf.mxu0
        %v405 = vadd.f32 %v352, %v404
        %v406 = vpop.f32.mrf.mxu0
        %v407 = vpop.f32.mrf.mxu0
        %v408 = vpop.f32.mrf.mxu0
        %409 = vdwg.mxu0
        %v410 = vtanh.pop %v405
        %v411 = vld [vmem:[#allocation2] sm:$0x1]
        %v412 = vld [vmem:[%s333] sm:$0x1]
        %v414 = vlaneseq
        %v415 = vshrl.u32 %v414, 7
        %v416 = vsub.s32 0, %v415
        %v417 = vrot.slane %v412, %v416
        %v419 = vmul.f32 %v410, %v417
        %v420 = vsel %vm366, %v419, 0.0
        %421 = vadd.xlane.f32.xlu0 %v420
        %v422 = vpop.xlane.xlu0 %421
        %v424 = vlaneseq
        %v425 = vshrl.u32 %v424, 7
        %v426 = vsub.s32 0, %v425
        %v427 = vrot.slane %v422, %v426
        %v428 = vlaneseq
        %v429 = vshrl.u32 %v428, 7
        %v430 = vsub.s32 1, %v429
        %v431 = vrot.slane %v422, %v430
        %v432 = vlaneseq
        %v433 = vshrl.u32 %v432, 7
        %v434 = vsub.s32 2, %v433
        %v435 = vrot.slane %v422, %v434
        %v436 = vlaneseq
        %v437 = vshrl.u32 %v436, 7
        %v438 = vsub.s32 3, %v437
        %v439 = vrot.slane %v422, %v438
        %v440 = vlaneseq
        %v441 = vshrl.u32 %v440, 7
        %v442 = vsub.s32 4, %v441
        %v443 = vrot.slane %v422, %v442
        %v444 = vlaneseq
        %v445 = vshrl.u32 %v444, 7
        %v446 = vsub.s32 5, %v445
        %v447 = vrot.slane %v422, %v446
        %v448 = vlaneseq
        %v449 = vshrl.u32 %v448, 7
        %v450 = vsub.s32 6, %v449
        %v451 = vrot.slane %v422, %v450
        %v452 = vlaneseq
        %v453 = vshrl.u32 %v452, 7
        %v454 = vsub.s32 7, %v453
        %v455 = vrot.slane %v422, %v454
        %v456 = vcombine.low %v427, %v431
        %v457 = vcombine.low %v435, %v439
        %v458 = vcombine.low %v443, %v447
        %v459 = vcombine.low %v451, %v455
        %v461 = vunpack.c.l.s4 1966171168
        %v462 = vunpack.c.0.s8 %v461
        %v463 = vlaneseq
        %v464 = vshrl.u32 %v463, 7
        %v465 = vsub.s32 %v462, %v464
        %v466 = vrot.slane %v456, %v465
        %v468 = vunpack.c.l.s4 1966171168
        %v469 = vunpack.c.0.s8 %v468
        %v470 = vlaneseq
        %v471 = vshrl.u32 %v470, 7
        %v472 = vsub.s32 %v469, %v471
        %v473 = vrot.slane %v457, %v472
        %v475 = vunpack.c.l.s4 1966171168
        %v476 = vunpack.c.0.s8 %v475
        %v477 = vlaneseq
        %v478 = vshrl.u32 %v477, 7
        %v479 = vsub.s32 %v476, %v478
        %v480 = vrot.slane %v458, %v479
        %v482 = vunpack.c.l.s4 1966171168
        %v483 = vunpack.c.0.s8 %v482
        %v484 = vlaneseq
        %v485 = vshrl.u32 %v484, 7
        %v486 = vsub.s32 %v483, %v485
        %v487 = vrot.slane %v459, %v486
        %v488 = vcombine.low %v466, %v473
        %v489 = vcombine.low %v480, %v487
        %v491 = vunpack.c.l.s4 1966171168
        %v492 = vunpack.c.0.s8 %v491
        %v493 = vlaneseq
        %v494 = vshrl.u32 %v493, 7
        %v495 = vsub.s32 %v492, %v494
        %v496 = vrot.slane %v488, %v495
        %v498 = vunpack.c.l.s4 1966171168
        %v499 = vunpack.c.0.s8 %v498
        %v500 = vlaneseq
        %v501 = vshrl.u32 %v500, 7
        %v502 = vsub.s32 %v499, %v501
        %v503 = vrot.slane %v489, %v502
        %v504 = vcombine.low %v496, %v503
        %505 = vset.pattern.permute.xlu0 0
        %506 = vperm.xlu0 %505, %v504
        %v507 = vpop.permute.xlu0 %506
        %v508 = vlaneseq
        %v509 = vand.u32 %v508, 127
        %v510 = vlaneseq
        %v511 = vshrl.u32 %v510, 7
        %v512 = vsub.s32 %v509, %v511
        %v513 = vrot.slane %v507, %v512
        %v515 = vunpack.c.l.s4 1966171168
        %v516 = vunpack.c.0.s8 %v515
        %v517 = vlaneseq
        %v518 = vshrl.u32 %v517, 7
        %v519 = vsub.s32 %v516, %v518
        %v520 = vrot.slane %v513, %v519
        %v522 = vunpack.c.l.s4 1966171168
        %v523 = vunpack.c.0.s8 %v522
        %v524 = vlaneseq
        %v525 = vshrl.u32 %v524, 7
        %v526 = vsub.s32 %v523, %v525
        %v527 = vrot.slane %v520, %v526
        %v529 = vadd.f32 %v411, %v527
        %vm530 = vcmask 57344
        %531 = vst.msk [vmem:[#allocation2] sm:$0x1] %vm530, %v529
        // Predicated region
        $region57: #{tpu_custom_call.1} parent=39 // pred_check
          %p532 = pneg %p335
        $region58: #{tpu_custom_call.1} parent=39 // pred_check_branch
          %534 = sbr.rel (%p532) target = $region60
        $region59: #{tpu_custom_call.1} parent=39 // pred_region
          %v535 = vld [vmem:[#allocation2] sm:$0x1]
          %v536 = vld [vmem:[%s288] sm:$0x1]
          %v537 = vadd.f32 %v535, %v536
          %v538 = vsel %vm530, %v537, -inf
          %539 = vmax.xlane.f32.xlu0 %v538
          %v540 = vpop.xlane.xlu0 %539
          %v541 = vsub.f32 %v537, %v540
          %v542 = vmul.f32 %v541, 1.442695
          %v543 = vpow.pop %v542
          %v544 = vsel %vm530, %v543, 0.0
          %545 = vadd.xlane.f32.xlu0 %v544
          %v546 = vpop.xlane.xlu0 %545
          %v547 = vrcp.pop %v546
          %v548 = vmul.f32 %v543, %v547
          %vm549 = vcmask 64512
          %v551 = vsel %vm549, %v548, 0
          %553 = vmatprep.subr.mxu0 0.0
          %554 = vmatpush1.msra.mxu0 0.0
          %555 = vmatprep.subr.mxu0 0.0
          %556 = vmatpush1.msra.mxu0 0.0
          %557 = vmatprep.subr.mxu0 0.0
          %558 = vmatpush1.msra.mxu0 0.0
          %559 = vmatprep.subr.mxu0 0.0
          %560 = vmatpush1.msra.mxu0 0.0
          %561 = vmatprep.subr.mxu0 0.0
          %562 = vmatpush1.msra.mxu0 0.0
          %563 = vmatprep.subr.mxu0 0.0
          %564 = vmatpush1.msra.mxu0 0.0
          %565 = vmatprep.subr.mxu0 0.0
          %566 = vmatpush1.msra.mxu0 0.0
          %567 = vmatprep.subr.mxu0 0.0
          %568 = vmatpush1.msra.mxu0 0.0
          %569 = vmatprep.subr.mxu0 0.0
          %570 = vmatpush1.msra.mxu0 0.0
          %571 = vmatprep.subr.mxu0 0.0
          %572 = vmatpush1.msra.mxu0 0.0
          %573 = vmatprep.subr.mxu0 0.0
          %574 = vmatpush1.msra.mxu0 0.0
          %575 = vmatprep.subr.mxu0 0.0
          %576 = vmatpush1.msra.mxu0 0.0
          %577 = vmatprep.subr.mxu0 0.0
          %578 = vmatpush1.msra.mxu0 0.0
          %579 = vmatprep.subr.mxu0 0.0
          %580 = vmatpush1.msra.mxu0 0.0
          %581 = vmatprep.subr.mxu0 0.0
          %582 = vmatpush1.msra.mxu0 0.0
          %583 = vmatprep.subr.mxu0 0.0
          %584 = vmatpush1.msra.mxu0 %v341
          %585 = vmatprep.subr.mxu0 0.0
          %586 = vmatpush2.msra.mxu0 0.0
          %587 = vmatprep.subr.mxu0 0.0
          %588 = vmatpush2.msra.mxu0 0.0
          %589 = vmatprep.subr.mxu0 0.0
          %590 = vmatpush2.msra.mxu0 0.0
          %591 = vmatprep.subr.mxu0 0.0
          %592 = vmatpush2.msra.mxu0 0.0
          %593 = vmatprep.subr.mxu0 0.0
          %594 = vmatpush2.msra.mxu0 0.0
          %595 = vmatprep.subr.mxu0 0.0
          %596 = vmatpush2.msra.mxu0 0.0
          %597 = vmatprep.subr.mxu0 0.0
          %598 = vmatpush2.msra.mxu0 0.0
          %599 = vmatprep.subr.mxu0 0.0
          %600 = vmatpush2.msra.mxu0 0.0
          %601 = vmatprep.subr.mxu0 0.0
          %602 = vmatpush2.msra.mxu0 0.0
          %603 = vmatprep.subr.mxu0 0.0
          %604 = vmatpush2.msra.mxu0 0.0
          %605 = vmatprep.subr.mxu0 0.0
          %606 = vmatpush2.msra.mxu0 0.0
          %607 = vmatprep.subr.mxu0 0.0
          %608 = vmatpush2.msra.mxu0 0.0
          %609 = vmatprep.subr.mxu0 0.0
          %610 = vmatpush2.msra.mxu0 0.0
          %611 = vmatprep.subr.mxu0 0.0
          %612 = vmatpush2.msra.mxu0 0.0
          %613 = vmatprep.subr.mxu0 0.0
          %614 = vmatpush2.msra.mxu0 0.0
          %615 = vmatprep.subr.mxu0 0.0
          %616 = vmatpush2.msra.mxu0 0.0
          %617 = vmatprep.mubr.f32.mxu0 0.0
          %618 = vmatmul.mubr.f32.gmra.mxu0 %v551
          %v619 = vpop.f32.mrf.mxu0
          %v620 = vadd.f32 0.0, %v619
          %v621 = vpop.f32.mrf.mxu0
          %622 = vdwg.mxu0
          %vm623 = vcmask 253952
          %624 = vst.msk [vmem:[%s327] sm:$0x1] %vm623, %v620
        $region60: #{tpu_custom_call.1} parent=39 // pred_fallthru
          _
        %s625 = sand.u32 %s175, 1
        %s626 = scalar_lea.sflag [#allocation5], %s625
        %s627 = sand.u32 %s175, 1
        %s628 = scalar_lea.vmem [#allocation9], %s627
        // Predicated region
        $region61: #{tpu_custom_call.1} parent=39 // pred_check
          %p629 = pneg %p185
        $region62: #{tpu_custom_call.1} parent=39 // pred_check_branch
          %631 = sbr.rel (%p629) target = $region64
        $region63: #{tpu_custom_call.1} parent=39 // pred_region
          %s633 = ssub.s32 16, 16
          %634 = vsyncadd %s626, %s633
          %s635 = smul.addr %s29, 16
          %s636 = scalar_lea.hbm %s5, %s635
          %s638 = sshll.u32 %s628, 4
          %s639 = int_to_ptr.vmem [resolvable:$true] %s638
          %641 = dma.vmem_to_hbm [thread:$0]  %s639, 16, %s636, %s626
        $region64: #{tpu_custom_call.1} parent=39 // pred_fallthru
          _
      $region40: #{tpu_custom_call.1} parent=5 // pred_fallthru
        _
      %p642 = scmp.le.s32.totalorder 2, %s20
      // Predicated region
      $region65: #{tpu_custom_call.1} parent=5 // pred_check
        %p643 = pneg %p642
      $region66: #{tpu_custom_call.1} parent=5 // pred_check_branch
        %645 = sbr.rel (%p643) target = $region68
      $region67: #{tpu_custom_call.1} parent=5 // pred_region
        %s646 = ssub.s32 %s20, 2
        // Predicated region
        $region69: #{tpu_custom_call.1} parent=67 // pred_check
          %p647 = pneg %p191
        $region70: #{tpu_custom_call.1} parent=67 // pred_check_branch
          %649 = sbr.rel (%p647) target = $region72
        $region71: #{tpu_custom_call.1} parent=67 // pred_region
          %s650 = sand.u32 %s176, 1
          %s651 = scalar_lea.sflag [#allocation5], %s650
          %s652 = sand.u32 %s176, 1
          %s653 = scalar_lea.vmem [#allocation9], %s652
          %654 = dma.done %s651, 16
        $region72: #{tpu_custom_call.1} parent=67 // pred_fallthru
          _
      $region68: #{tpu_custom_call.1} parent=5 // pred_fallthru
        _
    $region6: #{tpu_custom_call.1} parent=1 // loop_footer
      %s24 = sadd.s32 1, %s20
    $region7: #{tpu_custom_call.1} parent=1 // loop_footer_branch
      %19 = sbr.rel target = $region3
    $region8: #{tpu_custom_call.1} parent=1 // loop_exit
      _
    %655 = vsyncpa [#allocation4], 1
    %s656 = scalar_lea.sflag [#allocation4], 1
    %657 = vsyncpa %s656, 1
    %658 = vsyncpa [#allocation7], 1
    %s659 = scalar_lea.sflag [#allocation7], 1
    %660 = vsyncpa %s659, 1
    %661 = vsyncpa [#allocation5], 1
    %s662 = scalar_lea.sflag [#allocation5], 1
    %663 = vsyncpa %s662, 1

</llo_original>
